<compile_context>
chip_gen: v6e
topology: v6e:2x2x1
jax: 0.10.0
libtpu: 0.0.40
codegen_flags: <defaults>
</compile_context>

<pallas_src>
import jax
import jax.numpy as jnp
from jax.experimental import pallas as pl
from jax.experimental.pallas import tpu as pltpu


def _softplus(x):
    # Numerically stable softplus on VPU/EUP primitives only.
    return jnp.maximum(x, 0.0) + jnp.log1p(jnp.exp(-jnp.abs(x)))


def _radial_flow_kernel(x_ref, v_ref, w_ref, b_ref, x_out_ref, logdet_ref):
    x = x_ref[...]                                   # (TB, D)  native dtype
    v = v_ref[...]                                   # (TB, D)  native dtype
    w = w_ref[...]                                   # (D, D+2) packed [wc^T | wa^T | wb^T]
    bias = b_ref[...].astype(jnp.float32)            # (1, D+2) packed [bc | ba | bb]

    d = x.shape[-1]

    # One MXU matmul yields c, a_lin and b_lin in one shot (f32 accumulation).
    proj = jnp.dot(v, w, preferred_element_type=jnp.float32) + bias   # (TB, D+2)
    c = proj[:, :d]                                  # (TB, D)
    a_lin = proj[:, d:d + 1]                         # (TB, 1)
    b_lin = proj[:, d + 1:d + 2]                     # (TB, 1)

    # Match the PyTorch ordering: a/b are updated BEFORE h() is evaluated.
    a = jnp.exp(a_lin)                               # (TB, 1)
    b = -a + _softplus(b_lin)                        # (TB, 1)

    xf = x.astype(jnp.float32)
    diff = xf - c                                    # (TB, D)
    r = jnp.sqrt(jnp.sum(diff * diff, axis=-1, keepdims=True))        # (TB, 1)

    h = 1.0 / (a + r)                                # h(r)      (a > 0, r >= 0)
    h_prime = -(h * h)                               # h'(r)
    tmp = b * h                                      # (TB, 1)

    x_new = xf + tmp * diff                          # (TB, D)
    log_det = (d - 1) * jnp.log(1.0 + tmp) + jnp.log(1.0 + tmp + b * h_prime * r)

    x_out_ref[...] = x_new.astype(x_out_ref.dtype)
    logdet_ref[...] = log_det.astype(logdet_ref.dtype)
    # TODO(synk): log_det is a lane-width-1 store (masked vst); for very large
    # tiled B consider a lane-dense (1, B) layout + wrapper reshape.


def pack_params(params):
    """One-time packing of the PyTorch-layout params for the kernel (done at init,
    not per call): W = [wc^T | wa^T | wb^T]  (D, D+2),  b = [bc | ba | bb]  (1, D+2)."""
    w = jnp.concatenate([params["wc"].T, params["wa"].T, params["wb"].T], axis=1)
    b = jnp.concatenate([params["bc"], params["ba"], params["bb"]], axis=1)
    return {"w": w, "b": b}


def radial_flow(x, v, packed, *, block_b=512):
    """Pallas implementation of RadialFlow.forward.

    Args:
      x: (B, D) input.
      v: (B, D) encoder output.
      packed: dict from pack_params(): w:(D, D+2), b:(1, D+2).
    Returns:
      (x_transformed (B, D) in x.dtype, v (unchanged), log_det (B, 1) f32)
    """
    B, D = x.shape
    w, b = packed["w"], packed["b"]

    TB = min(B, block_b)
    Bp = ((B + TB - 1) // TB) * TB
    if Bp != B:
        pad = Bp - B
        x_p = jnp.pad(x, ((0, pad), (0, 0)))
        v_p = jnp.pad(v, ((0, pad), (0, 0)))
    else:
        x_p, v_p = x, v

    x_out, log_det = pl.pallas_call(
        _radial_flow_kernel,
        out_shape=(
            jax.ShapeDtypeStruct((Bp, D), x.dtype),
            jax.ShapeDtypeStruct((Bp, 1), jnp.float32),
        ),
        grid=(Bp // TB,),
        in_specs=[
            pl.BlockSpec((TB, D), lambda i: (i, 0)),          # x
            pl.BlockSpec((TB, D), lambda i: (i, 0)),          # v
            pl.BlockSpec((D, D + 2), lambda i: (0, 0)),       # packed weights (resident)
            pl.BlockSpec((1, D + 2), lambda i: (0, 0)),       # packed biases  (resident)
        ],
        out_specs=(
            pl.BlockSpec((TB, D), lambda i: (i, 0)),          # x_out
            pl.BlockSpec((TB, 1), lambda i: (i, 0)),          # log_det
        ),
        compiler_params=pltpu.CompilerParams(
            dimension_semantics=("parallel",)),
    )(x_p, v_p, w, b)

    if Bp != B:
        x_out = x_out[:B]
        log_det = log_det[:B]
    # v is returned untouched (no kernel copy needed).
    return x_out, v, log_det


def _reference(x, v, params):
    """Plain-JAX reference matching the PyTorch module exactly."""
    a_lin = v @ params["wa"].T + params["ba"][0]          # (B,1)
    b_lin = v @ params["wb"].T + params["bb"][0]          # (B,1)
    c = v @ params["wc"].T + params["bc"][0]              # (B,D)
    d = x.shape[-1]
    a = jnp.exp(a_lin)
    b = -a + jax.nn.softplus(b_lin)
    r = jnp.linalg.norm(x - c, axis=1, keepdims=True)
    h = 1.0 / (a + r)
    h_prime = -(h ** 2)
    tmp = b * h
    x_new = x + tmp * (x - c)
    log_det = (d - 1) * jnp.log(1.0 + tmp) + jnp.log(1.0 + tmp + b * h_prime * r)
    return x_new, v, log_det


def init_params(key, dim):
    """Deterministic synthetic init (nn.Linear-style uniform fan-in scaling),
    stored in PyTorch (out, in) convention."""
    ks = jax.random.split(key, 6)
    bound = 1.0 / jnp.sqrt(dim)
    wa = jax.random.uniform(ks[0], (1, dim), jnp.float32, -bound, bound)
    ba = jax.random.uniform(ks[1], (1, 1), jnp.float32, -bound, bound)
    wb = jax.random.uniform(ks[2], (1, dim), jnp.float32, -bound, bound)
    bb = jax.random.uniform(ks[3], (1, 1), jnp.float32, -bound, bound)
    wc = jax.random.uniform(ks[4], (dim, dim), jnp.float32, -bound, bound)
    bc = jax.random.uniform(ks[5], (1, dim), jnp.float32, -bound, bound)
    return {"wa": wa, "ba": ba, "wb": wb, "bb": bb, "wc": wc, "bc": bc}


if __name__ == "__main__":
    B, D = 8, 32
    key = jax.random.PRNGKey(0)
    kx, kv, kp = jax.random.split(key, 3)
    x = jax.random.normal(kx, (B, D), jnp.float32)
    v = jax.random.normal(kv, (B, D), jnp.float32)
    params = init_params(kp, D)
    packed = pack_params(params)          # one-time packing, hoisted out of the call path

    x_out, v_out, log_det = radial_flow(x, v, packed)
    jax.block_until_ready((x_out, v_out, log_det))

    # Sanity-check against the pure-JAX reference of the PyTorch semantics.
    x_ref, v_ref, ld_ref = _reference(x, v, params)
    assert x_out.shape == (B, D) and v_out.shape == (B, D) and log_det.shape == (B, 1)
    assert x_out.dtype == x.dtype
    assert jnp.allclose(x_out, x_ref, atol=1e-4, rtol=1e-4)
    assert jnp.allclose(v_out, v_ref, atol=1e-6)
    assert jnp.allclose(log_det, ld_ref, atol=1e-4, rtol=1e-4)

    print("KERNEL_OK")
</pallas_src>

<mosaic_0001>
module attributes {stable_mosaic.version = 11 : i64} {
  func.func @_radial_flow_kernel(%arg0: i32, %arg1: memref<8x32xf32, #tpu.memory_space<vmem>>, %arg2: memref<8x32xf32, #tpu.memory_space<vmem>>, %arg3: memref<32x34xf32, #tpu.memory_space<vmem>>, %arg4: memref<1x34xf32, #tpu.memory_space<vmem>>, %arg5: memref<8x32xf32, #tpu.memory_space<vmem>>, %arg6: memref<8x1xf32, #tpu.memory_space<vmem>>) attributes {dimension_semantics = [#tpu.dimension_semantics<parallel>], iteration_bounds = array<i64: 1>, scalar_prefetch = 0 : i64, scratch_operands = 0 : i64, tpu.core_type = #tpu.core_type<tc>, window_params = [{transform_indices = @transform_0, window_bounds = array<i64: 8, 32>}, {transform_indices = @transform_1, window_bounds = array<i64: 8, 32>}, {pipeline_mode = #tpu.pipeline_mode<synchronous>, transform_indices = @transform_2, window_bounds = array<i64: 32, 34>}, {pipeline_mode = #tpu.pipeline_mode<synchronous>, transform_indices = @transform_3, window_bounds = array<i64: 1, 34>}, {transform_indices = @transform_4, window_bounds = array<i64: 8, 32>}, {transform_indices = @transform_5, window_bounds = array<i64: 8, 1>}]} {
    %c0 = arith.constant 0 : index
    %c0_0 = arith.constant 0 : index
    %0 = vector.load %arg1[%c0, %c0_0] : memref<8x32xf32, #tpu.memory_space<vmem>>, vector<8x32xf32>
    %c0_1 = arith.constant 0 : index
    %c0_2 = arith.constant 0 : index
    %1 = vector.load %arg2[%c0_1, %c0_2] : memref<8x32xf32, #tpu.memory_space<vmem>>, vector<8x32xf32>
    %c0_3 = arith.constant 0 : index
    %c0_4 = arith.constant 0 : index
    %2 = vector.load %arg3[%c0_3, %c0_4] : memref<32x34xf32, #tpu.memory_space<vmem>>, vector<32x34xf32>
    %c0_5 = arith.constant 0 : index
    %c0_6 = arith.constant 0 : index
    %3 = vector.load %arg4[%c0_5, %c0_6] : memref<1x34xf32, #tpu.memory_space<vmem>>, vector<1x34xf32>
    %cst = arith.constant dense<0.000000e+00> : vector<8x34xf32>
    %4 = tpu.matmul %1, %2, %cst {dimension_numbers = #tpu.dot_dimension_numbers<[1], [0], [0], [1], [0, 0, 1, 1], [], []>} : vector<8x32xf32>, vector<32x34xf32>, vector<8x34xf32> -> vector<8x34xf32>
    %5 = vector.broadcast %3 : vector<1x34xf32> to vector<8x34xf32>
    %6 = arith.addf %4, %5 : vector<8x34xf32>
    %7 = vector.extract_strided_slice %6 {offsets = [0, 0], sizes = [8, 32], strides = [1, 1]} : vector<8x34xf32> to vector<8x32xf32>
    %8 = vector.extract_strided_slice %6 {offsets = [0, 32], sizes = [8, 1], strides = [1, 1]} : vector<8x34xf32> to vector<8x1xf32>
    %9 = vector.extract_strided_slice %6 {offsets = [0, 33], sizes = [8, 1], strides = [1, 1]} : vector<8x34xf32> to vector<8x1xf32>
    %10 = math.exp %8 : vector<8x1xf32>
    %cst_7 = arith.constant 0.000000e+00 : f32
    %11 = vector.broadcast %cst_7 : f32 to vector<8x1xf32>
    %12 = arith.subf %11, %10 : vector<8x1xf32>
    %cst_8 = arith.constant 0.000000e+00 : f32
    %13 = vector.broadcast %cst_8 : f32 to vector<8x1xf32>
    %14 = arith.maximumf %9, %13 : vector<8x1xf32>
    %15 = math.absf %9 : vector<8x1xf32>
    %cst_9 = arith.constant 0.000000e+00 : f32
    %16 = vector.broadcast %cst_9 : f32 to vector<8x1xf32>
    %17 = arith.subf %16, %15 : vector<8x1xf32>
    %18 = math.exp %17 : vector<8x1xf32>
    %19 = math.log1p %18 : vector<8x1xf32>
    %20 = arith.addf %14, %19 : vector<8x1xf32>
    %21 = arith.addf %12, %20 : vector<8x1xf32>
    %22 = arith.subf %0, %7 : vector<8x32xf32>
    %23 = arith.mulf %22, %22 : vector<8x32xf32>
    %cst_10 = arith.constant dense<0.000000e+00> : vector<8xf32>
    %24 = vector.multi_reduction <add>, %23, %cst_10 [1] : vector<8x32xf32> to vector<8xf32>
    %25 = vector.shape_cast %24 : vector<8xf32> to vector<8x1xf32>
    %26 = math.sqrt %25 : vector<8x1xf32>
    %27 = arith.addf %10, %26 : vector<8x1xf32>
    %cst_11 = arith.constant 1.000000e+00 : f32
    %28 = vector.broadcast %cst_11 : f32 to vector<8x1xf32>
    %29 = arith.divf %28, %27 : vector<8x1xf32>
    %30 = arith.mulf %29, %29 : vector<8x1xf32>
    %cst_12 = arith.constant 0.000000e+00 : f32
    %31 = vector.broadcast %cst_12 : f32 to vector<8x1xf32>
    %32 = arith.subf %31, %30 : vector<8x1xf32>
    %33 = arith.mulf %21, %29 : vector<8x1xf32>
    %34 = vector.broadcast %33 : vector<8x1xf32> to vector<8x32xf32>
    %35 = arith.mulf %34, %22 : vector<8x32xf32>
    %36 = arith.addf %0, %35 : vector<8x32xf32>
    %cst_13 = arith.constant 1.000000e+00 : f32
    %37 = vector.broadcast %cst_13 : f32 to vector<8x1xf32>
    %38 = arith.addf %37, %33 : vector<8x1xf32>
    %39 = math.log %38 : vector<8x1xf32>
    %cst_14 = arith.constant 3.100000e+01 : f32
    %40 = vector.broadcast %cst_14 : f32 to vector<8x1xf32>
    %41 = arith.mulf %40, %39 : vector<8x1xf32>
    %cst_15 = arith.constant 1.000000e+00 : f32
    %42 = vector.broadcast %cst_15 : f32 to vector<8x1xf32>
    %43 = arith.addf %42, %33 : vector<8x1xf32>
    %44 = arith.mulf %21, %32 : vector<8x1xf32>
    %45 = arith.mulf %44, %26 : vector<8x1xf32>
    %46 = arith.addf %43, %45 : vector<8x1xf32>
    %47 = math.log %46 : vector<8x1xf32>
    %48 = arith.addf %41, %47 : vector<8x1xf32>
    %c0_16 = arith.constant 0 : index
    %c0_17 = arith.constant 0 : index
    %49 = vector.load %arg5[%c0_16, %c0_17] : memref<8x32xf32, #tpu.memory_space<vmem>>, vector<8x32xf32>
    tpu.vector_store %arg5[%c0_16, %c0_17], %36 {strides = array<i32>} : memref<8x32xf32, #tpu.memory_space<vmem>>, vector<8x32xf32>,
    %c0_18 = arith.constant 0 : index
    %c0_19 = arith.constant 0 : index
    %50 = vector.load %arg6[%c0_18, %c0_19] : memref<8x1xf32, #tpu.memory_space<vmem>>, vector<8x1xf32>
    tpu.vector_store %arg6[%c0_18, %c0_19], %48 {strides = array<i32>} : memref<8x1xf32, #tpu.memory_space<vmem>>, vector<8x1xf32>,
    return
  }
  func.func @transform_0(%arg0: i32) -> (i32, i32) {
    %c0_i32 = arith.constant 0 : i32
    %c0_i32_0 = arith.constant 0 : i32
    return %arg0, %c0_i32 : i32, i32
  }
  func.func @transform_1(%arg0: i32) -> (i32, i32) {
    %c0_i32 = arith.constant 0 : i32
    %c0_i32_0 = arith.constant 0 : i32
    return %arg0, %c0_i32 : i32, i32
  }
  func.func @transform_2(%arg0: i32) -> (i32, i32) {
    %c0_i32 = arith.constant 0 : i32
    %c0_i32_0 = arith.constant 0 : i32
    %c0_i32_1 = arith.constant 0 : i32
    return %c0_i32, %c0_i32_0 : i32, i32
  }
  func.func @transform_3(%arg0: i32) -> (i32, i32) {
    %c0_i32 = arith.constant 0 : i32
    %c0_i32_0 = arith.constant 0 : i32
    %c0_i32_1 = arith.constant 0 : i32
    return %c0_i32, %c0_i32_0 : i32, i32
  }
  func.func @transform_4(%arg0: i32) -> (i32, i32) {
    %c0_i32 = arith.constant 0 : i32
    %c0_i32_0 = arith.constant 0 : i32
    return %arg0, %c0_i32 : i32, i32
  }
  func.func @transform_5(%arg0: i32) -> (i32, i32) {
    %c0_i32 = arith.constant 0 : i32
    %c0_i32_0 = arith.constant 0 : i32
    return %arg0, %c0_i32 : i32, i32
  }
}

</mosaic_0001>

<llo_original>
// kernel: tpu_custom_call.1
$region0: #{tpu_custom_call.1}
  #allocation0 [shape = 'u32[]', space=smem, size = 0x4, offset = 0x4, fixed_abs, tag = 'smem constant byte address 0x4 - core index']
  #allocation1 [shape = 'u32[144,128]{1,0:T(1,128)}', space=vmem, size = 0x12000, scoped, tag = 'internal scratch']
  %s0 = inlined_call_operand.hbm [shape: f32[8,32], index: 0, kind: input, shape index: {}]
  %s1 = inlined_call_operand.hbm [shape: f32[8,32], index: 1, kind: input, shape index: {}]
  %s2 = inlined_call_operand.hbm [shape: f32[32,34], index: 2, kind: input, shape index: {}]
  %s3 = inlined_call_operand.vmem [shape: f32[1,34], index: 3, kind: input, shape index: {}]
  %s4 = inlined_call_operand.hbm [shape: f32[8,32], index: 4, kind: output, shape index: {0}]
  %s5 = inlined_call_operand.vmem [shape: f32[8,1], index: 5, kind: output, shape index: {1}]
  %6 = xla_tuple %s4, %s5
  %s7 = sld [smem:[#allocation0]]
  $region46: #{tpu_custom_call.1} parent=0
    _
  %s9 = ssub.s32 1, %s7
  %s10 = scalar_select 0, %s9, %s7
  $region1: #{tpu_custom_call.1} parent=0
    #allocation2 [shape = 'u8[4096]{0}', space=vmem, size = 0x1000, scoped, tag = 'input window, operand 0, single buffered']
    #allocation3 [shape = 's32[1]{0}', space=sflag, size = 0x4, scoped, tag = 'scoped memory for tpu_custom_call.1']
    #allocation4 [shape = 's32[1]{0}', space=sflag, size = 0x4, scoped, tag = 'scoped memory for tpu_custom_call.1']
    #allocation5 [shape = 'u8[4096]{0}', space=vmem, size = 0x1000, scoped, tag = 'input window, operand 1, single buffered']
    #allocation6 [shape = 's32[1]{0}', space=sflag, size = 0x4, scoped, tag = 'scoped memory for tpu_custom_call.1']
    #allocation7 [shape = 'u8[16384]{0}', space=vmem, size = 0x4000, scoped, tag = 'input window, operand 2, single buffered']
    #allocation8 [shape = 'u8[4096]{0}', space=vmem, size = 0x1000, scoped, tag = 'output window, operand 0, single buffered']
    %11 = vsyncpa [#allocation3], 0
    %12 = vsyncpa [#allocation6], 0
    %13 = vsyncpa [#allocation4], 0
    // Predicated region
    $region2: #{tpu_custom_call.1} parent=1 // pred_check
      _
    $region3: #{tpu_custom_call.1} parent=1 // pred_check_branch
      %15 = sbr.rel (0) target = $region5
    $region4: #{tpu_custom_call.1} parent=1 // pred_region
      %s17 = ssub.s32 128, 128
      %18 = vsyncadd [#allocation3], %s17
      %s20 = sshll.u32 [#allocation2], 4
      %s21 = int_to_ptr.vmem [resolvable:$true] %s20
      %23 = dma.hbm_to_vmem [thread:$0]  %s0, 128, %s21, [#allocation3]
    $region5: #{tpu_custom_call.1} parent=1 // pred_fallthru
      _
    // Predicated region
    $region6: #{tpu_custom_call.1} parent=1 // pred_check
      _
    $region7: #{tpu_custom_call.1} parent=1 // pred_check_branch
      %25 = sbr.rel (0) target = $region9
    $region8: #{tpu_custom_call.1} parent=1 // pred_region
      %s27 = ssub.s32 128, 128
      %28 = vsyncadd [#allocation6], %s27
      %s30 = sshll.u32 [#allocation5], 4
      %s31 = int_to_ptr.vmem [resolvable:$true] %s30
      %33 = dma.hbm_to_vmem [thread:$0]  %s1, 128, %s31, [#allocation6]
    $region9: #{tpu_custom_call.1} parent=1 // pred_fallthru
      _
    // Predicated region
    $region10: #{tpu_custom_call.1} parent=1 // pred_check
      _
    $region11: #{tpu_custom_call.1} parent=1 // pred_check_branch
      %35 = sbr.rel (0) target = $region13
    $region12: #{tpu_custom_call.1} parent=1 // pred_region
      %s37 = ssub.s32 512, 512
      %38 = vsyncadd [#allocation6], %s37
      %s39 = sshll.u32 [#allocation7], 4
      %s40 = int_to_ptr.vmem [resolvable:$true] %s39
      %45 = dma.hbm_to_vmem [thread:$0]  %s2, 512, %s40, [#allocation6], 128, 128, 8
    $region13: #{tpu_custom_call.1} parent=1 // pred_fallthru
      _
    // Predicated region
    $region14: #{tpu_custom_call.1} parent=1 // pred_check
      _
    $region15: #{tpu_custom_call.1} parent=1 // pred_check_branch
      %47 = sbr.rel (0) target = $region17
    $region16: #{tpu_custom_call.1} parent=1 // pred_region
      _
    $region17: #{tpu_custom_call.1} parent=1 // pred_fallthru
      _
    // Predicated region
    $region18: #{tpu_custom_call.1} parent=1 // pred_check
      _
    $region19: #{tpu_custom_call.1} parent=1 // pred_check_branch
      %49 = sbr.rel (0) target = $region21
    $region20: #{tpu_custom_call.1} parent=1 // pred_region
      %50 = dma.done [#allocation3], 128
    $region21: #{tpu_custom_call.1} parent=1 // pred_fallthru
      _
    // Predicated region
    $region22: #{tpu_custom_call.1} parent=1 // pred_check
      _
    $region23: #{tpu_custom_call.1} parent=1 // pred_check_branch
      %52 = sbr.rel (0) target = $region25
    $region24: #{tpu_custom_call.1} parent=1 // pred_region
      %53 = dma.done [#allocation6], 128
    $region25: #{tpu_custom_call.1} parent=1 // pred_fallthru
      _
    // Predicated region
    $region26: #{tpu_custom_call.1} parent=1 // pred_check
      _
    $region27: #{tpu_custom_call.1} parent=1 // pred_check_branch
      %55 = sbr.rel (0) target = $region29
    $region28: #{tpu_custom_call.1} parent=1 // pred_region
      %56 = dma.done [#allocation6], 512
    $region29: #{tpu_custom_call.1} parent=1 // pred_fallthru
      _
    %v57 = vld [vmem:[#allocation2] sm:$0xff]
    %v58 = vld [vmem:[#allocation5] sm:$0xff]
    %v59 = vld [vmem:[#allocation7] sm:$0xff]
    %v60 = vld [vmem:[#allocation7 + $0x8] sm:$0xff]
    %v61 = vld [vmem:[#allocation7 + $0x10] sm:$0xff]
    %v62 = vld [vmem:[#allocation7 + $0x18] sm:$0xff]
    %v63 = vld [vmem:[%s3] sm:$0x1]
    %v65 = vlaneseq
    %v66 = vshrl.u32 %v65, 7
    %v67 = vsub.s32 0, %v66
    %v68 = vrot.slane %v63, %v67
    %vm70 = vcmask 261120
    %v72 = vsel %vm70, %v58, 0
    %74 = vmatprep.subr.mxu0 0.0
    %75 = vmatpush1.msra.mxu0 0.0
    %76 = vmatprep.subr.mxu0 0.0
    %77 = vmatpush1.msra.mxu0 0.0
    %78 = vmatprep.subr.mxu0 0.0
    %79 = vmatpush1.msra.mxu0 0.0
    %80 = vmatprep.subr.mxu0 0.0
    %81 = vmatpush1.msra.mxu0 0.0
    %82 = vmatprep.subr.mxu0 0.0
    %83 = vmatpush1.msra.mxu0 0.0
    %84 = vmatprep.subr.mxu0 0.0
    %85 = vmatpush1.msra.mxu0 0.0
    %86 = vmatprep.subr.mxu0 0.0
    %87 = vmatpush1.msra.mxu0 0.0
    %88 = vmatprep.subr.mxu0 0.0
    %89 = vmatpush1.msra.mxu0 0.0
    %90 = vmatprep.subr.mxu0 0.0
    %91 = vmatpush1.msra.mxu0 0.0
    %92 = vmatprep.subr.mxu0 0.0
    %93 = vmatpush1.msra.mxu0 0.0
    %94 = vmatprep.subr.mxu0 0.0
    %95 = vmatpush1.msra.mxu0 0.0
    %96 = vmatprep.subr.mxu0 0.0
    %97 = vmatpush1.msra.mxu0 0.0
    %98 = vmatprep.subr.mxu0 0.0
    %99 = vmatpush1.msra.mxu0 %v62
    %100 = vmatprep.subr.mxu0 0.0
    %101 = vmatpush1.msra.mxu0 %v61
    %102 = vmatprep.subr.mxu0 0.0
    %103 = vmatpush1.msra.mxu0 %v60
    %104 = vmatprep.subr.mxu0 0.0
    %105 = vmatpush1.msra.mxu0 %v59
    %106 = vmatprep.subr.mxu0 0.0
    %107 = vmatpush2.msra.mxu0 0.0
    %108 = vmatprep.subr.mxu0 0.0
    %109 = vmatpush2.msra.mxu0 0.0
    %110 = vmatprep.subr.mxu0 0.0
    %111 = vmatpush2.msra.mxu0 0.0
    %112 = vmatprep.subr.mxu0 0.0
    %113 = vmatpush2.msra.mxu0 0.0
    %114 = vmatprep.subr.mxu0 0.0
    %115 = vmatpush2.msra.mxu0 0.0
    %116 = vmatprep.subr.mxu0 0.0
    %117 = vmatpush2.msra.mxu0 0.0
    %118 = vmatprep.subr.mxu0 0.0
    %119 = vmatpush2.msra.mxu0 0.0
    %120 = vmatprep.subr.mxu0 0.0
    %121 = vmatpush2.msra.mxu0 0.0
    %122 = vmatprep.subr.mxu0 0.0
    %123 = vmatpush2.msra.mxu0 0.0
    %124 = vmatprep.subr.mxu0 0.0
    %125 = vmatpush2.msra.mxu0 0.0
    %126 = vmatprep.subr.mxu0 0.0
    %127 = vmatpush2.msra.mxu0 0.0
    %128 = vmatprep.subr.mxu0 0.0
    %129 = vmatpush2.msra.mxu0 0.0
    %130 = vmatprep.subr.mxu0 0.0
    %131 = vmatpush2.msra.mxu0 0.0
    %132 = vmatprep.subr.mxu0 0.0
    %133 = vmatpush2.msra.mxu0 0.0
    %134 = vmatprep.subr.mxu0 0.0
    %135 = vmatpush2.msra.mxu0 0.0
    %136 = vmatprep.subr.mxu0 0.0
    %137 = vmatpush2.msra.mxu0 0.0
    %138 = vmatprep.mubr.f32.mxu0 0.0
    %139 = vmatmul.mubr.f32.gmra.mxu0 %v72
    %v140 = vpop.f32.mrf.mxu0
    %v141 = vadd.f32 %v68, %v140
    %v142 = vpop.f32.mrf.mxu0
    %143 = vdwg.mxu0
    %v144 = vmul.f32 %v141, 1.442695
    %v145 = vpow.pop %v144
    %v146 = vsub.f32 0.0, %v145
    %v147 = vmax.f32 %v141, 0.0
    %v148 = vand.u32 2147483647, %v141
    %v149 = vsub.f32 0.0, %v148
    %v150 = vmul.f32 %v149, 1.442695
    %v151 = vpow.pop %v150
    %v152 = vadd.f32 %v151, 1.0
    %v153 = vlog2.pop %v152
    %v154 = vmul.f32 %v153, 0.6931472
    %v155 = vmul.f32 -0.5, %v151
    %v156 = vadd.f32 %v155, 1.0
    %v157 = vmul.f32 %v156, %v151
    %v158 = vand.u32 2147483647, %v151
    %vm159 = vcmp.lt.f32.partialorder %v158, 0.0004427343
    %v160 = vsel %vm159, %v157, %v154
    %v161 = vadd.f32 %v147, %v160
    %163 = vrot.lane.b32.xlu0 %v161, 127
    %v164 = vpop.permute.xlu0 %163
    %v166 = vadd.f32 %v146, %v164
    %v167 = vsub.f32 %v57, %v141
    %v168 = vmul.f32 %v167, %v167
    %v169 = vsel %vm70, %v168, 0.0
    %170 = vadd.xlane.f32.xlu0 %v169
    %v171 = vpop.xlane.xlu0 %170
    %v172 = vrsqrt.pop %v171
    %v173 = vmul.f32 %v171, %v172
    %vm174 = vcmp.eq.f32.partialorder %v171, inf
    %v175 = vsel %vm174, %v171, %v173
    %vm176 = vcmp.eq.f32.partialorder %v171, 0.0
    %v177 = vand.u32 %v171, 2147483648
    %v178 = vsel %vm176, %v177, %v175
    %v179 = vadd.f32 %v145, %v178
    %v180 = vrcp.pop %v179
    %v181 = vmul.f32 1.0, %v180
    %v182 = vmul.f32 %v181, %v181
    %v183 = vsub.f32 0.0, %v182
    %v184 = vmul.f32 %v166, %v181
    %186 = vset.pattern.permute.xlu0 32
    %187 = vperm.xlu0 %186, %v184
    %v188 = vpop.permute.xlu0 %187
    %v190 = vmul.f32 %v188, %v167
    %v191 = vadd.f32 %v57, %v190
    %v192 = vadd.f32 %v184, 1.0
    %v193 = vlog2.pop %v192
    %v194 = vmul.f32 %v193, 0.6931472
    %v195 = vmul.f32 %v194, 31.0
    %v196 = vmul.f32 %v166, %v183
    %v197 = vmul.f32 %v196, %v178
    %v198 = vadd.f32 %v192, %v197
    %v199 = vlog2.pop %v198
    %v200 = vmul.f32 %v199, 0.6931472
    %v201 = vadd.f32 %v195, %v200
    %202 = vst.msk [vmem:[#allocation8] sm:$0xff] %vm70, %v191
    %204 = vrot.lane.b32.xlu0 %v201, 96
    %v205 = vpop.permute.xlu0 %204
    %vm207 = vcmask 7168
    %208 = vst.msk [vmem:[%s5] sm:$0xff] %vm207, %v205
    // Predicated region
    $region30: #{tpu_custom_call.1} parent=1 // pred_check
      _
    $region31: #{tpu_custom_call.1} parent=1 // pred_check_branch
      %210 = sbr.rel (0) target = $region33
    $region32: #{tpu_custom_call.1} parent=1 // pred_region
      %s212 = ssub.s32 128, 128
      %213 = vsyncadd [#allocation4], %s212
      %s215 = sshll.u32 [#allocation8], 4
      %s216 = int_to_ptr.vmem [resolvable:$true] %s215
      %218 = dma.vmem_to_hbm [thread:$0]  %s216, 128, %s4, [#allocation4]
    $region33: #{tpu_custom_call.1} parent=1 // pred_fallthru
      _
    // Predicated region
    $region34: #{tpu_custom_call.1} parent=1 // pred_check
      _
    $region35: #{tpu_custom_call.1} parent=1 // pred_check_branch
      %220 = sbr.rel (0) target = $region37
    $region36: #{tpu_custom_call.1} parent=1 // pred_region
      _
    $region37: #{tpu_custom_call.1} parent=1 // pred_fallthru
      _
    // Predicated region
    $region38: #{tpu_custom_call.1} parent=1 // pred_check
      _
    $region39: #{tpu_custom_call.1} parent=1 // pred_check_branch
      %222 = sbr.rel (0) target = $region41
    $region40: #{tpu_custom_call.1} parent=1 // pred_region
      %223 = dma.done [#allocation4], 128
    $region41: #{tpu_custom_call.1} parent=1 // pred_fallthru
      _
    // Predicated region
    $region42: #{tpu_custom_call.1} parent=1 // pred_check
      _
    $region43: #{tpu_custom_call.1} parent=1 // pred_check_branch
      %225 = sbr.rel (0) target = $region45
    $region44: #{tpu_custom_call.1} parent=1 // pred_region
      _
    $region45: #{tpu_custom_call.1} parent=1 // pred_fallthru
      _
    %226 = vsyncpa [#allocation3], 1
    %227 = vsyncpa [#allocation6], 1
    %228 = vsyncpa [#allocation4], 1

</llo_original>
